<compile_context>
chip_gen: v7x
topology: tpu7x:2x2x1
jax: 0.10.0
libtpu: 0.0.40
codegen_flags: <defaults>
</compile_context>

<pallas_src>
import functools
import math

import jax
import jax.numpy as jnp
import numpy as np
from jax import lax
from jax.experimental import pallas as pl
from jax.experimental.pallas import tpu as pltpu


def _round_up(x, m):
    return ((x + m - 1) // m) * m


def _hw_defaults():
    """Generation-appropriate (tile_q, tile_k, vmem_limit_bytes)."""
    try:
        info = pltpu.get_tpu_info()
        vmem_bytes = int(getattr(info, "vmem_capacity_bytes", 64 << 20))
    except Exception:  # introspection unavailable -> conservative defaults
        vmem_bytes = 64 << 20
    if vmem_bytes >= (100 << 20):      # v5e / v6e: 128 MiB physical VMEM
        return 512, 1024, 96 << 20
    return 256, 512, 44 << 20          # v7x-class: 64 MiB physical VMEM


def _largest_divisor_at_most(n, cap):
    cap = int(max(1, min(n, cap)))
    for d in range(cap, 0, -1):
        if n % d == 0:
            return d
    return 1


def _sandwich_kernel(scales_ref, p_ref, qt_ref, out_ref, base_ref, *,
                     tq, tk, hb, shift, masked_fill, bidirectional):
    """Grid = (q_tiles, k_tiles, head_groups).

    scales_ref : SMEM f32[H]            per-head multiplier (scalar prefetch)
    p_ref      : VMEM f32[tq, F]        query-side cos/sin table tile
    qt_ref     : VMEM f32[F, tk]        key-side  cos/sin table tile
    out_ref    : VMEM f32[hb, tq, tk]   output tile for one head group
    base_ref   : VMEM f32[tq, tk]       head-independent base bias (scratch)
    """
    i = pl.program_id(0)
    j = pl.program_id(1)
    hg = pl.program_id(2)

    if bidirectional:
        build = hg == 0
    else:
        # Tiles entirely above the diagonal hold the constant masked value.
        fully_masked = (j * tk) >= ((i + 1) * tq)
        build = jnp.logical_and(hg == 0, jnp.logical_not(fully_masked))

        @pl.when(jnp.logical_and(hg == 0, fully_masked))
        def _fill():
            base_ref[...] = jnp.full((tq, tk), masked_fill, jnp.float32)

    @pl.when(build)
    def _build():
        # sum_m cos(rel * f_m) == P @ Qt  (angle-addition identity -> MXU,
        # zero in-kernel transcendentals).
        base = jnp.dot(p_ref[...], qt_ref[...],
                       preferred_element_type=jnp.float32) - shift
        if not bidirectional:
            row_g = i * tq + lax.broadcasted_iota(jnp.int32, (tq, tk), 0)
            col_g = j * tk + lax.broadcasted_iota(jnp.int32, (tq, tk), 1)
            base = jnp.where(col_g <= row_g, base, jnp.float32(masked_fill))
        base_ref[...] = base

    # hb lane-dense stores; the base tile is re-used for every head.
    for t in range(hb):
        out_ref[t] = base_ref[...] * scales_ref[hg * hb + t]


def sandwich_relative_position_bias(query_seq_length, key_seq_length, *,
                                    num_attention_heads, hidden_size,
                                    bidirectional, max_seq_len=512,
                                    tile_q=None, tile_k=None, head_block=None):
    """Equivalent of SandwichRelativePositionEmbedding.forward -> (1, H, q, k) f32."""
    del max_seq_len  # sliced |i-j| distances do not depend on the table size
    q = int(query_seq_length)
    k = int(key_seq_length)
    H = int(num_attention_heads)

    dq, dk, vmem_limit = _hw_defaults()
    if tile_q is None:
        tile_q = min(dq, _round_up(q, 8))
    if tile_k is None:
        tile_k = min(dk, _round_up(k, 128))
    assert tile_q % 8 == 0 and tile_k % 128 == 0

    q_pad = _round_up(q, tile_q)
    k_pad = _round_up(k, tile_k)

    num_freq = int(math.ceil(hidden_size / 2))
    feat = 2 * num_freq
    feat_pad = _round_up(feat, 128)

    # How many heads fit per grid step (the output block is double-buffered).
    tile_bytes = tile_q * tile_k * 4
    fixed_bytes = 2 * (tile_q * feat_pad + feat_pad * tile_k) * 4 + tile_bytes
    out_budget = max(2 * tile_bytes, vmem_limit - fixed_bytes - (4 << 20))
    if head_block is None:
        head_block = _largest_divisor_at_most(H, out_budget // (2 * tile_bytes))
    assert 1 <= head_block <= H and H % head_block == 0

    # Host-side (float64) 1-D tables: only O((q+k) * hidden/2) transcendentals.
    inv_freq = 1.0 / 10000.0 ** (
        2.0 * np.arange(1, num_freq + 1, dtype=np.float64) / hidden_size)
    a = np.arange(q_pad, dtype=np.float64) + (k - q)   # query-side phase index
    b = np.arange(k_pad, dtype=np.float64)             # key-side phase index
    af = a[:, None] * inv_freq[None, :]                # (q_pad, M)
    bf = inv_freq[:, None] * b[None, :]                # (M, k_pad)
    p_tab = np.zeros((q_pad, feat_pad), np.float32)
    p_tab[:, :num_freq] = np.cos(af)
    p_tab[:, num_freq:feat] = np.sin(af)
    qt_tab = np.zeros((feat_pad, k_pad), np.float32)
    qt_tab[:num_freq, :] = np.cos(bf)
    qt_tab[num_freq:feat, :] = np.sin(bf)
    p_tab = jnp.asarray(p_tab)
    qt_tab = jnp.asarray(qt_tab)

    # Per-head multiplier: 1 / ((h+1) * 8 / H) == H / (8 * (h+1)).
    scales = jnp.asarray(
        H / (8.0 * np.arange(1, H + 1, dtype=np.float64)), dtype=jnp.float32)

    shift = hidden_size / 2.0
    masked_fill = float(num_freq) - hidden_size / 2.0   # tril'ed entries (rel == 0)

    grid = (q_pad // tile_q, k_pad // tile_k, H // head_block)
    kernel = functools.partial(
        _sandwich_kernel, tq=tile_q, tk=tile_k, hb=head_block, shift=shift,
        masked_fill=masked_fill, bidirectional=bool(bidirectional))

    out = pl.pallas_call(
        kernel,
        out_shape=jax.ShapeDtypeStruct((H, q_pad, k_pad), jnp.float32),
        grid_spec=pltpu.PrefetchScalarGridSpec(
            num_scalar_prefetch=1,
            grid=grid,
            in_specs=[
                pl.BlockSpec((tile_q, feat_pad), lambda i, j, hg, s: (i, 0)),
                pl.BlockSpec((feat_pad, tile_k), lambda i, j, hg, s: (0, j)),
            ],
            out_specs=pl.BlockSpec((head_block, tile_q, tile_k),
                                   lambda i, j, hg, s: (hg, i, j)),
            scratch_shapes=[pltpu.VMEM((tile_q, tile_k), jnp.float32)],
        ),
        compiler_params=pltpu.CompilerParams(
            dimension_semantics=("parallel", "parallel", "arbitrary"),
            vmem_limit_bytes=int(vmem_limit)),
    )(scales, p_tab, qt_tab)

    # PyTorch broadcasting yields a leading batch-of-1 dim: (1, H, q, k).
    return out[:, :q, :k][None]


def _reference(query_seq_length, key_seq_length, *, num_attention_heads,
               hidden_size, bidirectional, max_seq_len=512):
    """Pure-numpy transcription of the PyTorch forward (for validation)."""
    n = max(max(query_seq_length, key_seq_length), max_seq_len)
    ctx = np.arange(1 - n, 1)[None, :] * -1
    mem = np.arange(1 - n, 1)[:, None] * -1
    relative_position = np.abs(mem - ctx)
    relative_position = relative_position[-query_seq_length:, -key_seq_length:]
    if not bidirectional:
        relative_position = np.tril(relative_position)
    m = np.arange(1, hidden_size / 2 + 1, dtype=np.float64)
    inv_freq = 1.0 / 10000.0 ** (2.0 * m / hidden_size)
    _bias = np.sum(np.cos(relative_position[:, :, None] * inv_freq), axis=2)
    bias = np.tile(_bias[None], (num_attention_heads, 1, 1))
    bias_scales = np.arange(1, num_attention_heads + 1)[:, None, None]
    scaled_bias = (bias - hidden_size / 2) / (
        bias_scales * 8 / num_attention_heads)[None]
    return scaled_bias.astype(np.float32)


if __name__ == "__main__":
    # The module's forward takes only (static) sequence lengths — no tensor
    # inputs and no learned parameters; the PRNG key is created only for
    # protocol compliance (nothing in the forward is stochastic).
    _key = jax.random.PRNGKey(0)
    del _key

    cases = [
        # (num_heads, hidden_per_head, q, k, tile_q, tile_k, head_block)
        (4, 32, 8, 8, None, None, None),     # single grid step, all heads fused
        (3, 32, 24, 200, 8, 128, None),      # multi (q,k) tile grid, 3 heads/step
        (6, 64, 40, 136, 16, 128, 2),        # multiple head groups reuse base scratch
    ]
    for num_heads, hidden, q, k, tq, tk, hb in cases:
        for bidirectional in (True, False):
            out = sandwich_relative_position_bias(
                q, k,
                num_attention_heads=num_heads,
                hidden_size=hidden,
                bidirectional=bidirectional,
                tile_q=tq, tile_k=tk, head_block=hb)
            out = jax.block_until_ready(out)
            assert out.shape == (1, num_heads, q, k), out.shape
            assert out.dtype == jnp.float32

            ref = _reference(q, k,
                             num_attention_heads=num_heads,
                             hidden_size=hidden,
                             bidirectional=bidirectional)
            np.testing.assert_allclose(np.asarray(out), ref,
                                       rtol=1e-5, atol=2e-4)

    print("KERNEL_OK")
</pallas_src>

<mosaic_0001>
module attributes {stable_mosaic.version = 11 : i64} {
  func.func @_sandwich_kernel(%arg0: i32, %arg1: i32, %arg2: i32, %arg3: memref<4xf32, #tpu.memory_space<smem>>, %arg4: memref<8x128xf32, #tpu.memory_space<vmem>>, %arg5: memref<128x128xf32, #tpu.memory_space<vmem>>, %arg6: memref<4x8x128xf32, #tpu.memory_space<vmem>>, %arg7: memref<8x128xf32, #tpu.memory_space<vmem>>) attributes {dimension_semantics = [#tpu.dimension_semantics<parallel>, #tpu.dimension_semantics<parallel>, #tpu.dimension_semantics<arbitrary>], iteration_bounds = array<i64: 1, 1, 1>, scalar_prefetch = 1 : i64, scratch_operands = 1 : i64, tpu.core_type = #tpu.core_type<tc>, window_params = [{transform_indices = @transform_0, window_bounds = array<i64: 8, 128>}, {transform_indices = @transform_1, window_bounds = array<i64: 128, 128>}, {transform_indices = @transform_2, window_bounds = array<i64: 4, 8, 128>}]} {
    %c0_i32 = arith.constant 0 : i32
    %0 = arith.cmpi eq, %arg2, %c0_i32 : i32
    %1 = arith.extui %0 : i1 to i32
    %c0_i32_0 = arith.constant 0 : i32
    %2 = arith.cmpi ne, %1, %c0_i32_0 : i32
    scf.if %2 {
      %c0_21 = arith.constant 0 : index
      %c0_22 = arith.constant 0 : index
      %43 = vector.load %arg4[%c0_21, %c0_22] : memref<8x128xf32, #tpu.memory_space<vmem>>, vector<8x128xf32>
      %c0_23 = arith.constant 0 : index
      %c0_24 = arith.constant 0 : index
      %44 = vector.load %arg5[%c0_23, %c0_24] : memref<128x128xf32, #tpu.memory_space<vmem>>, vector<128x128xf32>
      %cst = arith.constant dense<0.000000e+00> : vector<8x128xf32>
      %45 = tpu.matmul %43, %44, %cst {dimension_numbers = #tpu.dot_dimension_numbers<[1], [0], [0], [1], [0, 0, 1, 1], [], []>} : vector<8x128xf32>, vector<128x128xf32>, vector<8x128xf32> -> vector<8x128xf32>
      %cst_25 = arith.constant 1.600000e+01 : f32
      %46 = vector.broadcast %cst_25 : f32 to vector<8x128xf32>
      %47 = arith.subf %45, %46 : vector<8x128xf32>
      %c0_26 = arith.constant 0 : index
      %c0_27 = arith.constant 0 : index
      %48 = vector.load %arg7[%c0_26, %c0_27] : memref<8x128xf32, #tpu.memory_space<vmem>>, vector<8x128xf32>
      tpu.vector_store %arg7[%c0_26, %c0_27], %47 {strides = array<i32>} : memref<8x128xf32, #tpu.memory_space<vmem>>, vector<8x128xf32>,
    } else {
    }
    %c0 = arith.constant 0 : index
    %c0_1 = arith.constant 0 : index
    %3 = vector.load %arg7[%c0, %c0_1] : memref<8x128xf32, #tpu.memory_space<vmem>>, vector<8x128xf32>
    %c4_i32 = arith.constant 4 : i32
    %4 = arith.muli %arg2, %c4_i32 : i32
    %c0_i32_2 = arith.constant 0 : i32
    %5 = arith.addi %4, %c0_i32_2 : i32
    %6 = arith.index_cast %5 : i32 to index
    %7 = memref.load %arg3[%6] : memref<4xf32, #tpu.memory_space<smem>>
    %8 = vector.broadcast %7 : f32 to vector<8x128xf32>
    %9 = arith.mulf %3, %8 : vector<8x128xf32>
    %c0_3 = arith.constant 0 : index
    %c0_4 = arith.constant 0 : index
    %c0_5 = arith.constant 0 : index
    %10 = vector.load %arg6[%c0_3, %c0_4, %c0_5] : memref<4x8x128xf32, #tpu.memory_space<vmem>>, vector<1x8x128xf32>
    %11 = vector.shape_cast %10 : vector<1x8x128xf32> to vector<8x128xf32>
    %12 = vector.shape_cast %9 : vector<8x128xf32> to vector<1x8x128xf32>
    tpu.vector_store %arg6[%c0_3, %c0_4, %c0_5], %12 {strides = array<i32>} : memref<4x8x128xf32, #tpu.memory_space<vmem>>, vector<1x8x128xf32>,
    %c0_6 = arith.constant 0 : index
    %c0_7 = arith.constant 0 : index
    %13 = vector.load %arg7[%c0_6, %c0_7] : memref<8x128xf32, #tpu.memory_space<vmem>>, vector<8x128xf32>
    %c4_i32_8 = arith.constant 4 : i32
    %14 = arith.muli %arg2, %c4_i32_8 : i32
    %c1_i32 = arith.constant 1 : i32
    %15 = arith.addi %14, %c1_i32 : i32
    %16 = arith.index_cast %15 : i32 to index
    %17 = memref.load %arg3[%16] : memref<4xf32, #tpu.memory_space<smem>>
    %18 = vector.broadcast %17 : f32 to vector<8x128xf32>
    %19 = arith.mulf %13, %18 : vector<8x128xf32>
    %c1 = arith.constant 1 : index
    %c0_9 = arith.constant 0 : index
    %c0_10 = arith.constant 0 : index
    %20 = vector.load %arg6[%c1, %c0_9, %c0_10] : memref<4x8x128xf32, #tpu.memory_space<vmem>>, vector<1x8x128xf32>
    %21 = vector.shape_cast %20 : vector<1x8x128xf32> to vector<8x128xf32>
    %22 = vector.shape_cast %19 : vector<8x128xf32> to vector<1x8x128xf32>
    tpu.vector_store %arg6[%c1, %c0_9, %c0_10], %22 {strides = array<i32>} : memref<4x8x128xf32, #tpu.memory_space<vmem>>, vector<1x8x128xf32>,
    %c0_11 = arith.constant 0 : index
    %c0_12 = arith.constant 0 : index
    %23 = vector.load %arg7[%c0_11, %c0_12] : memref<8x128xf32, #tpu.memory_space<vmem>>, vector<8x128xf32>
    %c4_i32_13 = arith.constant 4 : i32
    %24 = arith.muli %arg2, %c4_i32_13 : i32
    %c2_i32 = arith.constant 2 : i32
    %25 = arith.addi %24, %c2_i32 : i32
    %26 = arith.index_cast %25 : i32 to index
    %27 = memref.load %arg3[%26] : memref<4xf32, #tpu.memory_space<smem>>
    %28 = vector.broadcast %27 : f32 to vector<8x128xf32>
    %29 = arith.mulf %23, %28 : vector<8x128xf32>
    %c2 = arith.constant 2 : index
    %c0_14 = arith.constant 0 : index
    %c0_15 = arith.constant 0 : index
    %30 = vector.load %arg6[%c2, %c0_14, %c0_15] : memref<4x8x128xf32, #tpu.memory_space<vmem>>, vector<1x8x128xf32>
    %31 = vector.shape_cast %30 : vector<1x8x128xf32> to vector<8x128xf32>
    %32 = vector.shape_cast %29 : vector<8x128xf32> to vector<1x8x128xf32>
    tpu.vector_store %arg6[%c2, %c0_14, %c0_15], %32 {strides = array<i32>} : memref<4x8x128xf32, #tpu.memory_space<vmem>>, vector<1x8x128xf32>,
    %c0_16 = arith.constant 0 : index
    %c0_17 = arith.constant 0 : index
    %33 = vector.load %arg7[%c0_16, %c0_17] : memref<8x128xf32, #tpu.memory_space<vmem>>, vector<8x128xf32>
    %c4_i32_18 = arith.constant 4 : i32
    %34 = arith.muli %arg2, %c4_i32_18 : i32
    %c3_i32 = arith.constant 3 : i32
    %35 = arith.addi %34, %c3_i32 : i32
    %36 = arith.index_cast %35 : i32 to index
    %37 = memref.load %arg3[%36] : memref<4xf32, #tpu.memory_space<smem>>
    %38 = vector.broadcast %37 : f32 to vector<8x128xf32>
    %39 = arith.mulf %33, %38 : vector<8x128xf32>
    %c3 = arith.constant 3 : index
    %c0_19 = arith.constant 0 : index
    %c0_20 = arith.constant 0 : index
    %40 = vector.load %arg6[%c3, %c0_19, %c0_20] : memref<4x8x128xf32, #tpu.memory_space<vmem>>, vector<1x8x128xf32>
    %41 = vector.shape_cast %40 : vector<1x8x128xf32> to vector<8x128xf32>
    %42 = vector.shape_cast %39 : vector<8x128xf32> to vector<1x8x128xf32>
    tpu.vector_store %arg6[%c3, %c0_19, %c0_20], %42 {strides = array<i32>} : memref<4x8x128xf32, #tpu.memory_space<vmem>>, vector<1x8x128xf32>,
    return
  }
  func.func @transform_0(%arg0: i32, %arg1: i32, %arg2: i32, %arg3: memref<4xf32, #tpu.memory_space<smem>>) -> (i32, i32) {
    %c0_i32 = arith.constant 0 : i32
    %c0_i32_0 = arith.constant 0 : i32
    return %arg0, %c0_i32 : i32, i32
  }
  func.func @transform_1(%arg0: i32, %arg1: i32, %arg2: i32, %arg3: memref<4xf32, #tpu.memory_space<smem>>) -> (i32, i32) {
    %c0_i32 = arith.constant 0 : i32
    %c0_i32_0 = arith.constant 0 : i32
    return %c0_i32, %arg1 : i32, i32
  }
  func.func @transform_2(%arg0: i32, %arg1: i32, %arg2: i32, %arg3: memref<4xf32, #tpu.memory_space<smem>>) -> (i32, i32, i32) {
    %c0_i32 = arith.constant 0 : i32
    return %arg2, %arg0, %arg1 : i32, i32, i32
  }
}

</mosaic_0001>

<llo_original>
// kernel: tpu_custom_call.1
$region0: #{tpu_custom_call.1}
  #allocation0 [shape = 'u32[]', space=smem, size = 0x4, offset = 0x4, fixed_abs, tag = 'smem constant byte address 0x4 - core index']
  #allocation1 [shape = 'u32[144,128]{1,0:T(1,128)}', space=vmem, size = 0x12000, scoped, tag = 'internal scratch']
  #allocation2 [shape = 'f32[8,128]{1,0:T(8,128)}', space=vmem, size = 0x1000, scoped, tag = 'scratch operand']
  #allocation3 [shape = 's32[1]{0}', space=sflag, size = 0x4, scoped, tag = 'scoped memory for tpu_custom_call.1']
  #allocation4 [shape = 'u8[512]{0}', space=smem, size = 0x200, scoped, tag = 'prefetched SMEM operand 0']
  %s0 = inlined_call_operand.hbm [shape: f32[4], index: 0, kind: input, shape index: {}]
  %s1 = inlined_call_operand.hbm [shape: f32[8,128], index: 1, kind: input, shape index: {}]
  %s2 = inlined_call_operand.hbm [shape: f32[128,128], index: 2, kind: input, shape index: {}]
  %s3 = inlined_call_operand.hbm [shape: f32[4,8,128], index: 3, kind: output, shape index: {}]
  %s4 = sld [smem:[#allocation0]]
  $region30: #{tpu_custom_call.1} parent=0
    _
  %s6 = ssub.s32 1, %s4
  %s7 = scalar_select 0, %s6, %s4
  %9 = dma.hbm_to_smem %s0, 16, [#allocation4], [#allocation3]
  %10 = dma.done [#allocation3], 16
  %11 = sfence
  $region1: #{tpu_custom_call.1} parent=0
    #allocation5 [shape = 'u8[4096]{0}', space=vmem, size = 0x1000, scoped, tag = 'input window, operand 1, single buffered']
    #allocation6 [shape = 's32[1]{0}', space=sflag, size = 0x4, scoped, tag = 'scoped memory for tpu_custom_call.1']
    #allocation7 [shape = 's32[1]{0}', space=sflag, size = 0x4, scoped, tag = 'scoped memory for tpu_custom_call.1']
    #allocation8 [shape = 'u8[65536]{0}', space=vmem, size = 0x10000, scoped, tag = 'input window, operand 2, single buffered']
    #allocation9 [shape = 's32[1]{0}', space=sflag, size = 0x4, scoped, tag = 'scoped memory for tpu_custom_call.1']
    #allocation10 [shape = 'u8[16384]{0}', space=vmem, size = 0x4000, scoped, tag = 'output window, operand 0, single buffered']
    %12 = vsyncpa [#allocation6], 0
    %13 = vsyncpa [#allocation9], 0
    %14 = vsyncpa [#allocation7], 0
    // Predicated region
    $region2: #{tpu_custom_call.1} parent=1 // pred_check
      _
    $region3: #{tpu_custom_call.1} parent=1 // pred_check_branch
      %16 = sbr.rel (0) target = $region5
    $region4: #{tpu_custom_call.1} parent=1 // pred_region
      %s18 = ssub.s32 128, 128
      %19 = vsyncadd [#allocation6], %s18
      %s21 = sshll.u32 [#allocation5], 4
      %s22 = int_to_ptr.vmem [resolvable:$true] %s21
      %24 = dma.hbm_to_vmem [thread:$0]  %s1, 128, %s22, [#allocation6]
    $region5: #{tpu_custom_call.1} parent=1 // pred_fallthru
      _
    // Predicated region
    $region6: #{tpu_custom_call.1} parent=1 // pred_check
      _
    $region7: #{tpu_custom_call.1} parent=1 // pred_check_branch
      %26 = sbr.rel (0) target = $region9
    $region8: #{tpu_custom_call.1} parent=1 // pred_region
      %s28 = ssub.s32 2048, 2048
      %29 = vsyncadd [#allocation9], %s28
      %s30 = sshll.u32 [#allocation8], 4
      %s31 = int_to_ptr.vmem [resolvable:$true] %s30
      %36 = dma.hbm_to_vmem [thread:$0]  %s2, 2048, %s31, [#allocation9], 128, 128, 8
    $region9: #{tpu_custom_call.1} parent=1 // pred_fallthru
      _
    // Predicated region
    $region10: #{tpu_custom_call.1} parent=1 // pred_check
      _
    $region11: #{tpu_custom_call.1} parent=1 // pred_check_branch
      %38 = sbr.rel (0) target = $region13
    $region12: #{tpu_custom_call.1} parent=1 // pred_region
      %39 = dma.done [#allocation6], 128
    $region13: #{tpu_custom_call.1} parent=1 // pred_fallthru
      _
    // Predicated region
    $region14: #{tpu_custom_call.1} parent=1 // pred_check
      _
    $region15: #{tpu_custom_call.1} parent=1 // pred_check_branch
      %41 = sbr.rel (0) target = $region17
    $region16: #{tpu_custom_call.1} parent=1 // pred_region
      %42 = dma.done [#allocation9], 2048
    $region17: #{tpu_custom_call.1} parent=1 // pred_fallthru
      _
    %p43 = scmp.eq.s32.totalorder 0, 0
    // Predicated region
    $region18: #{tpu_custom_call.1} parent=1 // pred_check
      %p44 = pneg %p43
    $region19: #{tpu_custom_call.1} parent=1 // pred_check_branch
      %46 = sbr.rel (%p44) target = $region21
    $region20: #{tpu_custom_call.1} parent=1 // pred_region
      %v47 = vld [vmem:[#allocation5] sm:$0xff]
      %v48 = vld [vmem:[#allocation8] sm:$0xff]
      %v49 = vld [vmem:[#allocation8 + $0x8] sm:$0xff]
      %v50 = vld [vmem:[#allocation8 + $0x10] sm:$0xff]
      %v51 = vld [vmem:[#allocation8 + $0x18] sm:$0xff]
      %v52 = vld [vmem:[#allocation8 + $0x20] sm:$0xff]
      %v53 = vld [vmem:[#allocation8 + $0x28] sm:$0xff]
      %v54 = vld [vmem:[#allocation8 + $0x30] sm:$0xff]
      %v55 = vld [vmem:[#allocation8 + $0x38] sm:$0xff]
      %v56 = vld [vmem:[#allocation8 + $0x40] sm:$0xff]
      %v57 = vld [vmem:[#allocation8 + $0x48] sm:$0xff]
      %v58 = vld [vmem:[#allocation8 + $0x50] sm:$0xff]
      %v59 = vld [vmem:[#allocation8 + $0x58] sm:$0xff]
      %v60 = vld [vmem:[#allocation8 + $0x60] sm:$0xff]
      %v61 = vld [vmem:[#allocation8 + $0x68] sm:$0xff]
      %v62 = vld [vmem:[#allocation8 + $0x70] sm:$0xff]
      %v63 = vld [vmem:[#allocation8 + $0x78] sm:$0xff]
      %64 = vmatprep.subr.mxu0 0.0
      %65 = vmatpush1.msra.mxu0 %v48
      %66 = vmatprep.subr.mxu0 0.0
      %67 = vmatpush1.msra.mxu0 %v49
      %68 = vmatprep.subr.mxu0 0.0
      %69 = vmatpush1.msra.mxu0 %v50
      %70 = vmatprep.subr.mxu0 0.0
      %71 = vmatpush1.msra.mxu0 %v51
      %72 = vmatprep.subr.mxu0 0.0
      %73 = vmatpush1.msra.mxu0 %v52
      %74 = vmatprep.subr.mxu0 0.0
      %75 = vmatpush1.msra.mxu0 %v53
      %76 = vmatprep.subr.mxu0 0.0
      %77 = vmatpush1.msra.mxu0 %v54
      %78 = vmatprep.subr.mxu0 0.0
      %79 = vmatpush1.msra.mxu0 %v55
      %80 = vmatprep.subr.mxu0 0.0
      %81 = vmatpush1.msra.mxu0 %v56
      %82 = vmatprep.subr.mxu0 0.0
      %83 = vmatpush1.msra.mxu0 %v57
      %84 = vmatprep.subr.mxu0 0.0
      %85 = vmatpush1.msra.mxu0 %v58
      %86 = vmatprep.subr.mxu0 0.0
      %87 = vmatpush1.msra.mxu0 %v59
      %88 = vmatprep.subr.mxu0 0.0
      %89 = vmatpush1.msra.mxu0 %v60
      %90 = vmatprep.subr.mxu0 0.0
      %91 = vmatpush1.msra.mxu0 %v61
      %92 = vmatprep.subr.mxu0 0.0
      %93 = vmatpush1.msra.mxu0 %v62
      %94 = vmatprep.subr.mxu0 0.0
      %95 = vmatpush1.msra.mxu0 %v63
      %96 = vmatprep.subr.mxu0 0.0
      %97 = vmatpush1.msra.mxu0 0.0
      %98 = vmatprep.subr.mxu0 0.0
      %99 = vmatpush1.msra.mxu0 0.0
      %100 = vmatprep.subr.mxu0 0.0
      %101 = vmatpush1.msra.mxu0 0.0
      %102 = vmatprep.subr.mxu0 0.0
      %103 = vmatpush1.msra.mxu0 0.0
      %104 = vmatprep.subr.mxu0 0.0
      %105 = vmatpush1.msra.mxu0 0.0
      %106 = vmatprep.subr.mxu0 0.0
      %107 = vmatpush1.msra.mxu0 0.0
      %108 = vmatprep.subr.mxu0 0.0
      %109 = vmatpush1.msra.mxu0 0.0
      %110 = vmatprep.subr.mxu0 0.0
      %111 = vmatpush1.msra.mxu0 0.0
      %112 = vmatprep.subr.mxu0 0.0
      %113 = vmatpush1.msra.mxu0 0.0
      %114 = vmatprep.subr.mxu0 0.0
      %115 = vmatpush1.msra.mxu0 0.0
      %116 = vmatprep.subr.mxu0 0.0
      %117 = vmatpush1.msra.mxu0 0.0
      %118 = vmatprep.subr.mxu0 0.0
      %119 = vmatpush1.msra.mxu0 0.0
      %120 = vmatprep.subr.mxu0 0.0
      %121 = vmatpush1.msra.mxu0 0.0
      %122 = vmatprep.subr.mxu0 0.0
      %123 = vmatpush1.msra.mxu0 0.0
      %124 = vmatprep.subr.mxu0 0.0
      %125 = vmatpush1.msra.mxu0 0.0
      %126 = vmatprep.subr.mxu0 0.0
      %127 = vmatpush1.msra.mxu0 0.0
      %128 = vmatprep.mubr.f32.mxu0 0.0
      %129 = vmatmul.mubr.f32.gmra.mrb[0].mxu0 %v47
      %v130 = vpop.f32.mrb[0].mxu0
      %v131 = vadd.f32 0.0, %v130
      %v132 = vpop.f32.mrb[0].mxu0
      %133 = vdwg.mxu0
      %v134 = vsub.f32 %v131, 16.0
      %135 = vst [vmem:[#allocation2] sm:$0xff] %v134
    $region21: #{tpu_custom_call.1} parent=1 // pred_fallthru
      _
    %v136 = vld [vmem:[#allocation2] sm:$0xff]
    %s137 = smul.u32 0, 4
    %s138 = sld [smem:[#allocation4 + %s137]]
    %v139 = vstv %s138
    %v140 = vmul.f32 %v136, %v139
    %141 = vst [vmem:[#allocation10] sm:$0xff] %v140
    %v142 = vld [vmem:[#allocation2] sm:$0xff]
    %s143 = sadd.s32 %s137, 1
    %s144 = sld [smem:[#allocation4 + %s143]]
    %v145 = vstv %s144
    %v146 = vmul.f32 %v142, %v145
    %s147 = scalar_lea.vmem [#allocation10], 8
    %148 = vst [vmem:[%s147] sm:$0xff] %v146
    %v149 = vld [vmem:[#allocation2] sm:$0xff]
    %s150 = sadd.s32 %s137, 2
    %s151 = sld [smem:[#allocation4 + %s150]]
    %v152 = vstv %s151
    %v153 = vmul.f32 %v149, %v152
    %s154 = scalar_lea.vmem [#allocation10], 16
    %155 = vst [vmem:[%s154] sm:$0xff] %v153
    %v156 = vld [vmem:[#allocation2] sm:$0xff]
    %s157 = sadd.s32 %s137, 3
    %s158 = sld [smem:[#allocation4 + %s157]]
    %v159 = vstv %s158
    %v160 = vmul.f32 %v156, %v159
    %s161 = scalar_lea.vmem [#allocation10], 24
    %162 = vst [vmem:[%s161] sm:$0xff] %v160
    // Predicated region
    $region22: #{tpu_custom_call.1} parent=1 // pred_check
      _
    $region23: #{tpu_custom_call.1} parent=1 // pred_check_branch
      %164 = sbr.rel (0) target = $region25
    $region24: #{tpu_custom_call.1} parent=1 // pred_region
      %s166 = ssub.s32 512, 512
      %167 = vsyncadd [#allocation7], %s166
      %s168 = sshll.u32 [#allocation10], 4
      %s169 = int_to_ptr.vmem [resolvable:$true] %s168
      %174 = dma.vmem_to_hbm [thread:$0]  %s169, 512, %s3, [#allocation7], 128, 128, 8
    $region25: #{tpu_custom_call.1} parent=1 // pred_fallthru
      _
    // Predicated region
    $region26: #{tpu_custom_call.1} parent=1 // pred_check
      _
    $region27: #{tpu_custom_call.1} parent=1 // pred_check_branch
      %176 = sbr.rel (0) target = $region29
    $region28: #{tpu_custom_call.1} parent=1 // pred_region
      %177 = dma.done [#allocation7], 512
    $region29: #{tpu_custom_call.1} parent=1 // pred_fallthru
      _
    %178 = vsyncpa [#allocation6], 1
    %179 = vsyncpa [#allocation9], 1
    %180 = vsyncpa [#allocation7], 1

</llo_original>
